<compile_context>
chip_gen: v7x
topology: tpu7x:2x2x1
jax: 0.10.0
libtpu: 0.0.40
codegen_flags: <defaults>
</compile_context>

<pallas_src>
import math
import functools

import jax
import jax.numpy as jnp
from jax import lax
from jax.experimental import pallas as pl
from jax.experimental.pallas import tpu as pltpu

_MH_COEF = 2.0 / (math.sqrt(3.0) * math.pi ** 0.25)


def _round_up(n, m):
    return ((n + m - 1) // m) * m


def _wavelet_conv_kernel(x_ref, trans_ref, invs_ref, w2_ref, o_ref, wav_s,
                         *, nb, O, C, K, W, Sp, Spad):
    """Fused WaveletConvND forward for `nb` batch elements.

    x_ref    : (nb, C, Sp)    flattened (H*W -> Sp) input, lane-dense
    trans_ref: (O, C)         translation
    invs_ref : (O, C)         1/scale
    w2_ref   : (K*K, O, O*C)  fused weight  wout * MH_COEF * wg, one matrix per tap
    o_ref    : (nb, O, Sp)    lane-dense output (valid flat positions h<HOUT, w<WOUT)
    wav_s    : (O*C, Spad)    VMEM scratch holding the wavelet of one batch element
    """
    # Zero the shift-padding columns once per grid step; the per-batch writes below
    # only touch [:, :Sp], so every shifted-window read sees deterministic data.
    # (Those columns only ever feed output positions that the wrapper discards.)
    if Spad > Sp:
        wav_s[:, pl.ds(Sp, Spad - Sp)] = jnp.zeros((O * C, Spad - Sp), jnp.float32)

    # Hoisted loads / broadcasts (JAX does not CSE broadcast_in_dim inside loops).
    trans_b = jnp.broadcast_to(trans_ref[...][:, :, None], (O, C, Sp))
    invs_b = jnp.broadcast_to(invs_ref[...][:, :, None], (O, C, Sp))
    w2 = w2_ref[...]                                     # (K*K, O, O*C)

    for b in range(nb):                                  # static unroll over the batch block
        x = x_ref[b]                                     # (C, Sp)
        # x_scaled = (x - translation) / scale  (reciprocal precomputed in wrapper)
        xs = (x[None, :, :] - trans_b) * invs_b          # (O, C, Sp)
        x2 = xs * xs                                     # reused for poly + exp
        # mexican hat; the 2/(sqrt(3)*pi^0.25) coefficient is folded into w2.
        wav = (x2 - 1.0) * jnp.exp(-0.5 * x2)            # (O, C, Sp)
        wav_s[:, pl.ds(0, Sp)] = wav.reshape(O * C, Sp)

        # Grouped KxK conv fused with the 1x1 conv: K*K accumulating dots over the
        # shifted windows of the VMEM-resident wavelet (in-kernel "im2col").
        # For a kept output position s = h*W + w (h < HOUT, w < WOUT) the tap
        # (dh, dw) source index is s + dh*W + dw, which never wraps a row.
        acc = jnp.zeros((O, Sp), jnp.float32)
        for dh in range(K):
            for dw in range(K):
                t = dh * K + dw
                win = wav_s[:, pl.ds(dh * W + dw, Sp)]   # (O*C, Sp)
                acc = acc + jnp.dot(w2[t], win, preferred_element_type=jnp.float32)
        o_ref[b] = acc.astype(o_ref.dtype)


def _pick_batch_block(B, C, O, Sp):
    """How many batch elements to process per grid step.

    Bigger blocks amortize the ~0.35 us per-grid-step pipeline overhead; an even
    grid extent keeps both v7x TensorCores busy under dimension_semantics=
    ("parallel",); blocks are budgeted far below the v7x 64 MiB VMEM (double-
    buffered input + output kept under a few MiB).
    """
    budget = 4 * 1024 * 1024

    def fits(nb):
        return 2 * nb * (C + O) * Sp * 4 <= budget

    for nb in (16, 8, 4, 2, 1):
        if B % nb == 0 and (B // nb) % 2 == 0 and fits(nb):
            return nb
    for nb in (16, 8, 4, 2, 1):
        if B % nb == 0 and fits(nb):
            return nb
    return 1


def wavelet_conv_nd(x, scale, translation, wg, wout, kernel_size):
    """Pallas wrapper.

    x           : (B, C, H, W)
    scale       : (O, C)        (values of the (1, O, C, 1, 1) parameter)
    translation : (O, C)
    wg          : (O, C, K, K)  per-output-group KxK conv weights
    wout        : (O, O)        1x1 conv weight (squeezed from (O, O, 1, 1))
    """
    B, C, H, W = x.shape
    O = wout.shape[0]
    K = kernel_size
    HOUT, WOUT = H - K + 1, W - K + 1
    S = H * W
    Sp = _round_up(S, 128)                                 # lane-dense flattened spatial
    Spad = _round_up(Sp + (K - 1) * (W + 1), 128)          # scratch width incl. shift room

    # Flatten spatial dims; zero-pad the lane axis to a 128 multiple (the padded
    # columns only feed output positions that are sliced away below).
    x_flat = x.reshape(B, C, S)
    if Sp != S:
        x_flat = jnp.pad(x_flat, ((0, 0), (0, 0), (0, Sp - S)))

    # 1/scale precomputed (reciprocal-multiply in kernel).  NOTE: only differs from
    # a true divide when scale ~ 0 (overflow / inf behaviour); init is scale = 1.
    inv_scale = 1.0 / scale

    # Fused weight: W2[o', o, c, dh, dw] = wout[o', o] * MH_COEF * wg[o, c, dh, dw],
    # reshaped to one (O, O*C) matrix per (dh, dw) tap (tap index dh*K + dw).
    w2 = _MH_COEF * (wout[:, :, None, None, None] * wg[None, :, :, :, :])
    w2_taps = jnp.transpose(w2, (3, 4, 0, 1, 2)).reshape(K * K, O, O * C)

    nb = _pick_batch_block(B, C, O, Sp)
    grid = (B // nb,)

    kernel = functools.partial(_wavelet_conv_kernel, nb=nb, O=O, C=C, K=K, W=W,
                               Sp=Sp, Spad=Spad)

    out = pl.pallas_call(
        kernel,
        out_shape=jax.ShapeDtypeStruct((B, O, Sp), x.dtype),
        grid=grid,
        in_specs=[
            pl.BlockSpec((nb, C, Sp), lambda i: (i, 0, 0)),
            pl.BlockSpec((O, C), lambda i: (0, 0)),
            pl.BlockSpec((O, C), lambda i: (0, 0)),
            pl.BlockSpec((K * K, O, O * C), lambda i: (0, 0, 0)),
        ],
        out_specs=pl.BlockSpec((nb, O, Sp), lambda i: (i, 0, 0)),
        scratch_shapes=[pltpu.VMEM((O * C, Spad), jnp.float32)],
        compiler_params=pltpu.CompilerParams(
            dimension_semantics=("parallel",),
            vmem_limit_bytes=32 * 1024 * 1024,
        ),
    )(x_flat, translation, inv_scale, w2_taps)

    # Valid output positions are flat index h*W + w with h < HOUT, w < WOUT.
    return out[:, :, : HOUT * W].reshape(B, O, HOUT, W)[:, :, :, :WOUT]


def _reference(x, scale, translation, wg, wout, K):
    """Pure-JAX reference mirroring the PyTorch forward."""
    B, C, H, W = x.shape
    O = wout.shape[0]
    xs = (x[:, None] - translation[None, :, :, None, None]) / scale[None, :, :, None, None]
    wav = _MH_COEF * (xs ** 2 - 1.0) * jnp.exp(-0.5 * xs ** 2)      # (B, O, C, H, W)
    wav_flat = wav.reshape(B, O * C, H, W)
    y1 = lax.conv_general_dilated(
        wav_flat, wg, window_strides=(1, 1), padding='VALID',
        dimension_numbers=('NCHW', 'OIHW', 'NCHW'), feature_group_count=O)
    y2 = lax.conv_general_dilated(
        y1, wout[:, :, None, None], window_strides=(1, 1), padding='VALID',
        dimension_numbers=('NCHW', 'OIHW', 'NCHW'))
    return y2


if __name__ == "__main__":
    # Small shapes: batch=2, input_dim=4, output_dim=4, spatial=16x16, kernel=3, padding=0.
    B, C_IN, O_DIM, H, W, K = 2, 4, 4, 16, 16, 3

    key = jax.random.PRNGKey(0)
    kx, kw1, kw2, ks, kt = jax.random.split(key, 5)

    x = jax.random.normal(kx, (B, C_IN, H, W), dtype=jnp.float32)

    # Parameters (shapes from WaveletConvND.__init__). Slightly perturbed scale /
    # translation to exercise the affine path deterministically.
    scale = 1.0 + 0.1 * jax.random.uniform(ks, (O_DIM, C_IN), dtype=jnp.float32)
    translation = 0.1 * jax.random.normal(kt, (O_DIM, C_IN), dtype=jnp.float32)

    # kaiming_uniform_(nonlinearity='linear'): bound = sqrt(3 / fan_in)
    fan_in_g = C_IN * K * K
    bound_g = math.sqrt(3.0 / fan_in_g)
    wg = jax.random.uniform(kw1, (O_DIM, C_IN, K, K), dtype=jnp.float32,
                            minval=-bound_g, maxval=bound_g)

    bound_o = math.sqrt(3.0 / O_DIM)
    wout = jax.random.uniform(kw2, (O_DIM, O_DIM), dtype=jnp.float32,
                              minval=-bound_o, maxval=bound_o)

    out = wavelet_conv_nd(x, scale, translation, wg, wout, K)
    out = jax.block_until_ready(out)

    ref = _reference(x, scale, translation, wg, wout, K)
    assert out.shape == (B, O_DIM, H - K + 1, W - K + 1), out.shape
    max_err = float(jnp.max(jnp.abs(out - ref)))
    assert jnp.allclose(out, ref, atol=1e-4, rtol=1e-4), max_err

    print("KERNEL_OK")
</pallas_src>

<mosaic_0001>
module attributes {stable_mosaic.version = 11 : i64} {
  func.func @_wavelet_conv_kernel(%arg0: i32, %arg1: memref<1x4x256xf32, #tpu.memory_space<vmem>>, %arg2: memref<4x4xf32, #tpu.memory_space<vmem>>, %arg3: memref<4x4xf32, #tpu.memory_space<vmem>>, %arg4: memref<9x4x16xf32, #tpu.memory_space<vmem>>, %arg5: memref<1x4x256xf32, #tpu.memory_space<vmem>>, %arg6: memref<16x384xf32, #tpu.memory_space<vmem>>) attributes {dimension_semantics = [#tpu.dimension_semantics<parallel>], iteration_bounds = array<i64: 2>, scalar_prefetch = 0 : i64, scratch_operands = 1 : i64, tpu.core_type = #tpu.core_type<tc>, window_params = [{transform_indices = @transform_0, window_bounds = array<i64: 1, 4, 256>}, {pipeline_mode = #tpu.pipeline_mode<synchronous>, transform_indices = @transform_1, window_bounds = array<i64: 4, 4>}, {pipeline_mode = #tpu.pipeline_mode<synchronous>, transform_indices = @transform_2, window_bounds = array<i64: 4, 4>}, {pipeline_mode = #tpu.pipeline_mode<synchronous>, transform_indices = @transform_3, window_bounds = array<i64: 9, 4, 16>}, {transform_indices = @transform_4, window_bounds = array<i64: 1, 4, 256>}]} {
    %cst = arith.constant 0.000000e+00 : f32
    %0 = vector.broadcast %cst : f32 to vector<16x128xf32>
    %c0 = arith.constant 0 : index
    %c256 = arith.constant 256 : index
    %1 = vector.load %arg6[%c0, %c256] : memref<16x384xf32, #tpu.memory_space<vmem>>, vector<16x128xf32>
    tpu.vector_store %arg6[%c0, %c256], %0 {strides = array<i32>} : memref<16x384xf32, #tpu.memory_space<vmem>>, vector<16x128xf32>,
    %c0_0 = arith.constant 0 : index
    %c0_1 = arith.constant 0 : index
    %2 = vector.load %arg2[%c0_0, %c0_1] : memref<4x4xf32, #tpu.memory_space<vmem>>, vector<4x4xf32>
    %3 = vector.shape_cast %2 : vector<4x4xf32> to vector<4x4x1xf32>
    %4 = vector.shape_cast %3 : vector<4x4x1xf32> to vector<4x4x1xf32>
    %5 = vector.broadcast %4 : vector<4x4x1xf32> to vector<4x4x256xf32>
    %c0_2 = arith.constant 0 : index
    %c0_3 = arith.constant 0 : index
    %6 = vector.load %arg3[%c0_2, %c0_3] : memref<4x4xf32, #tpu.memory_space<vmem>>, vector<4x4xf32>
    %7 = vector.shape_cast %6 : vector<4x4xf32> to vector<4x4x1xf32>
    %8 = vector.shape_cast %7 : vector<4x4x1xf32> to vector<4x4x1xf32>
    %9 = vector.broadcast %8 : vector<4x4x1xf32> to vector<4x4x256xf32>
    %c0_4 = arith.constant 0 : index
    %c0_5 = arith.constant 0 : index
    %c0_6 = arith.constant 0 : index
    %10 = vector.load %arg4[%c0_4, %c0_5, %c0_6] : memref<9x4x16xf32, #tpu.memory_space<vmem>>, vector<9x4x16xf32>
    %c0_7 = arith.constant 0 : index
    %c0_8 = arith.constant 0 : index
    %c0_9 = arith.constant 0 : index
    %11 = vector.load %arg1[%c0_7, %c0_8, %c0_9] : memref<1x4x256xf32, #tpu.memory_space<vmem>>, vector<1x4x256xf32>
    %12 = vector.shape_cast %11 : vector<1x4x256xf32> to vector<4x256xf32>
    %13 = vector.shape_cast %12 : vector<4x256xf32> to vector<1x4x256xf32>
    %14 = vector.broadcast %13 : vector<1x4x256xf32> to vector<4x4x256xf32>
    %15 = arith.subf %14, %5 : vector<4x4x256xf32>
    %16 = arith.mulf %15, %9 : vector<4x4x256xf32>
    %17 = arith.mulf %16, %16 : vector<4x4x256xf32>
    %cst_10 = arith.constant 1.000000e+00 : f32
    %18 = vector.broadcast %cst_10 : f32 to vector<4x4x256xf32>
    %19 = arith.subf %17, %18 : vector<4x4x256xf32>
    %cst_11 = arith.constant -5.000000e-01 : f32
    %20 = vector.broadcast %cst_11 : f32 to vector<4x4x256xf32>
    %21 = arith.mulf %20, %17 : vector<4x4x256xf32>
    %22 = math.exp %21 : vector<4x4x256xf32>
    %23 = arith.mulf %19, %22 : vector<4x4x256xf32>
    %24 = vector.shape_cast %23 : vector<4x4x256xf32> to vector<16x256xf32>
    %c0_12 = arith.constant 0 : index
    %c0_13 = arith.constant 0 : index
    %25 = vector.load %arg6[%c0_12, %c0_13] : memref<16x384xf32, #tpu.memory_space<vmem>>, vector<16x256xf32>
    tpu.vector_store %arg6[%c0_12, %c0_13], %24 {strides = array<i32>} : memref<16x384xf32, #tpu.memory_space<vmem>>, vector<16x256xf32>,
    %cst_14 = arith.constant 0.000000e+00 : f32
    %26 = vector.broadcast %cst_14 : f32 to vector<4x256xf32>
    %c0_15 = arith.constant 0 : index
    %c0_16 = arith.constant 0 : index
    %27 = vector.load %arg6[%c0_15, %c0_16] : memref<16x384xf32, #tpu.memory_space<vmem>>, vector<16x256xf32>
    %28 = vector.extract_strided_slice %10 {offsets = [0, 0, 0], sizes = [1, 4, 16], strides = [1, 1, 1]} : vector<9x4x16xf32> to vector<1x4x16xf32>
    %29 = vector.shape_cast %28 : vector<1x4x16xf32> to vector<4x16xf32>
    %cst_17 = arith.constant dense<0.000000e+00> : vector<4x256xf32>
    %30 = tpu.matmul %29, %27, %cst_17 {dimension_numbers = #tpu.dot_dimension_numbers<[1], [0], [0], [1], [0, 0, 1, 1], [], []>} : vector<4x16xf32>, vector<16x256xf32>, vector<4x256xf32> -> vector<4x256xf32>
    %31 = arith.addf %26, %30 : vector<4x256xf32>
    %c0_18 = arith.constant 0 : index
    %c1 = arith.constant 1 : index
    %32 = vector.load %arg6[%c0_18, %c1] : memref<16x384xf32, #tpu.memory_space<vmem>>, vector<16x256xf32>
    %33 = vector.extract_strided_slice %10 {offsets = [1, 0, 0], sizes = [1, 4, 16], strides = [1, 1, 1]} : vector<9x4x16xf32> to vector<1x4x16xf32>
    %34 = vector.shape_cast %33 : vector<1x4x16xf32> to vector<4x16xf32>
    %cst_19 = arith.constant dense<0.000000e+00> : vector<4x256xf32>
    %35 = tpu.matmul %34, %32, %cst_19 {dimension_numbers = #tpu.dot_dimension_numbers<[1], [0], [0], [1], [0, 0, 1, 1], [], []>} : vector<4x16xf32>, vector<16x256xf32>, vector<4x256xf32> -> vector<4x256xf32>
    %36 = arith.addf %31, %35 : vector<4x256xf32>
    %c0_20 = arith.constant 0 : index
    %c2 = arith.constant 2 : index
    %37 = vector.load %arg6[%c0_20, %c2] : memref<16x384xf32, #tpu.memory_space<vmem>>, vector<16x256xf32>
    %38 = vector.extract_strided_slice %10 {offsets = [2, 0, 0], sizes = [1, 4, 16], strides = [1, 1, 1]} : vector<9x4x16xf32> to vector<1x4x16xf32>
    %39 = vector.shape_cast %38 : vector<1x4x16xf32> to vector<4x16xf32>
    %cst_21 = arith.constant dense<0.000000e+00> : vector<4x256xf32>
    %40 = tpu.matmul %39, %37, %cst_21 {dimension_numbers = #tpu.dot_dimension_numbers<[1], [0], [0], [1], [0, 0, 1, 1], [], []>} : vector<4x16xf32>, vector<16x256xf32>, vector<4x256xf32> -> vector<4x256xf32>
    %41 = arith.addf %36, %40 : vector<4x256xf32>
    %c0_22 = arith.constant 0 : index
    %c16 = arith.constant 16 : index
    %42 = vector.load %arg6[%c0_22, %c16] : memref<16x384xf32, #tpu.memory_space<vmem>>, vector<16x256xf32>
    %43 = vector.extract_strided_slice %10 {offsets = [3, 0, 0], sizes = [1, 4, 16], strides = [1, 1, 1]} : vector<9x4x16xf32> to vector<1x4x16xf32>
    %44 = vector.shape_cast %43 : vector<1x4x16xf32> to vector<4x16xf32>
    %cst_23 = arith.constant dense<0.000000e+00> : vector<4x256xf32>
    %45 = tpu.matmul %44, %42, %cst_23 {dimension_numbers = #tpu.dot_dimension_numbers<[1], [0], [0], [1], [0, 0, 1, 1], [], []>} : vector<4x16xf32>, vector<16x256xf32>, vector<4x256xf32> -> vector<4x256xf32>
    %46 = arith.addf %41, %45 : vector<4x256xf32>
    %c0_24 = arith.constant 0 : index
    %c17 = arith.constant 17 : index
    %47 = vector.load %arg6[%c0_24, %c17] : memref<16x384xf32, #tpu.memory_space<vmem>>, vector<16x256xf32>
    %48 = vector.extract_strided_slice %10 {offsets = [4, 0, 0], sizes = [1, 4, 16], strides = [1, 1, 1]} : vector<9x4x16xf32> to vector<1x4x16xf32>
    %49 = vector.shape_cast %48 : vector<1x4x16xf32> to vector<4x16xf32>
    %cst_25 = arith.constant dense<0.000000e+00> : vector<4x256xf32>
    %50 = tpu.matmul %49, %47, %cst_25 {dimension_numbers = #tpu.dot_dimension_numbers<[1], [0], [0], [1], [0, 0, 1, 1], [], []>} : vector<4x16xf32>, vector<16x256xf32>, vector<4x256xf32> -> vector<4x256xf32>
    %51 = arith.addf %46, %50 : vector<4x256xf32>
    %c0_26 = arith.constant 0 : index
    %c18 = arith.constant 18 : index
    %52 = vector.load %arg6[%c0_26, %c18] : memref<16x384xf32, #tpu.memory_space<vmem>>, vector<16x256xf32>
    %53 = vector.extract_strided_slice %10 {offsets = [5, 0, 0], sizes = [1, 4, 16], strides = [1, 1, 1]} : vector<9x4x16xf32> to vector<1x4x16xf32>
    %54 = vector.shape_cast %53 : vector<1x4x16xf32> to vector<4x16xf32>
    %cst_27 = arith.constant dense<0.000000e+00> : vector<4x256xf32>
    %55 = tpu.matmul %54, %52, %cst_27 {dimension_numbers = #tpu.dot_dimension_numbers<[1], [0], [0], [1], [0, 0, 1, 1], [], []>} : vector<4x16xf32>, vector<16x256xf32>, vector<4x256xf32> -> vector<4x256xf32>
    %56 = arith.addf %51, %55 : vector<4x256xf32>
    %c0_28 = arith.constant 0 : index
    %c32 = arith.constant 32 : index
    %57 = vector.load %arg6[%c0_28, %c32] : memref<16x384xf32, #tpu.memory_space<vmem>>, vector<16x256xf32>
    %58 = vector.extract_strided_slice %10 {offsets = [6, 0, 0], sizes = [1, 4, 16], strides = [1, 1, 1]} : vector<9x4x16xf32> to vector<1x4x16xf32>
    %59 = vector.shape_cast %58 : vector<1x4x16xf32> to vector<4x16xf32>
    %cst_29 = arith.constant dense<0.000000e+00> : vector<4x256xf32>
    %60 = tpu.matmul %59, %57, %cst_29 {dimension_numbers = #tpu.dot_dimension_numbers<[1], [0], [0], [1], [0, 0, 1, 1], [], []>} : vector<4x16xf32>, vector<16x256xf32>, vector<4x256xf32> -> vector<4x256xf32>
    %61 = arith.addf %56, %60 : vector<4x256xf32>
    %c0_30 = arith.constant 0 : index
    %c33 = arith.constant 33 : index
    %62 = vector.load %arg6[%c0_30, %c33] : memref<16x384xf32, #tpu.memory_space<vmem>>, vector<16x256xf32>
    %63 = vector.extract_strided_slice %10 {offsets = [7, 0, 0], sizes = [1, 4, 16], strides = [1, 1, 1]} : vector<9x4x16xf32> to vector<1x4x16xf32>
    %64 = vector.shape_cast %63 : vector<1x4x16xf32> to vector<4x16xf32>
    %cst_31 = arith.constant dense<0.000000e+00> : vector<4x256xf32>
    %65 = tpu.matmul %64, %62, %cst_31 {dimension_numbers = #tpu.dot_dimension_numbers<[1], [0], [0], [1], [0, 0, 1, 1], [], []>} : vector<4x16xf32>, vector<16x256xf32>, vector<4x256xf32> -> vector<4x256xf32>
    %66 = arith.addf %61, %65 : vector<4x256xf32>
    %c0_32 = arith.constant 0 : index
    %c34 = arith.constant 34 : index
    %67 = vector.load %arg6[%c0_32, %c34] : memref<16x384xf32, #tpu.memory_space<vmem>>, vector<16x256xf32>
    %68 = vector.extract_strided_slice %10 {offsets = [8, 0, 0], sizes = [1, 4, 16], strides = [1, 1, 1]} : vector<9x4x16xf32> to vector<1x4x16xf32>
    %69 = vector.shape_cast %68 : vector<1x4x16xf32> to vector<4x16xf32>
    %cst_33 = arith.constant dense<0.000000e+00> : vector<4x256xf32>
    %70 = tpu.matmul %69, %67, %cst_33 {dimension_numbers = #tpu.dot_dimension_numbers<[1], [0], [0], [1], [0, 0, 1, 1], [], []>} : vector<4x16xf32>, vector<16x256xf32>, vector<4x256xf32> -> vector<4x256xf32>
    %71 = arith.addf %66, %70 : vector<4x256xf32>
    %c0_34 = arith.constant 0 : index
    %c0_35 = arith.constant 0 : index
    %c0_36 = arith.constant 0 : index
    %72 = vector.load %arg5[%c0_34, %c0_35, %c0_36] : memref<1x4x256xf32, #tpu.memory_space<vmem>>, vector<1x4x256xf32>
    %73 = vector.shape_cast %72 : vector<1x4x256xf32> to vector<4x256xf32>
    %74 = vector.shape_cast %71 : vector<4x256xf32> to vector<1x4x256xf32>
    tpu.vector_store %arg5[%c0_34, %c0_35, %c0_36], %74 {strides = array<i32>} : memref<1x4x256xf32, #tpu.memory_space<vmem>>, vector<1x4x256xf32>,
    return
  }
  func.func @transform_0(%arg0: i32) -> (i32, i32, i32) {
    %c0_i32 = arith.constant 0 : i32
    %c0_i32_0 = arith.constant 0 : i32
    %c0_i32_1 = arith.constant 0 : i32
    return %arg0, %c0_i32, %c0_i32_0 : i32, i32, i32
  }
  func.func @transform_1(%arg0: i32) -> (i32, i32) {
    %c0_i32 = arith.constant 0 : i32
    %c0_i32_0 = arith.constant 0 : i32
    %c0_i32_1 = arith.constant 0 : i32
    return %c0_i32, %c0_i32_0 : i32, i32
  }
  func.func @transform_2(%arg0: i32) -> (i32, i32) {
    %c0_i32 = arith.constant 0 : i32
    %c0_i32_0 = arith.constant 0 : i32
    %c0_i32_1 = arith.constant 0 : i32
    return %c0_i32, %c0_i32_0 : i32, i32
  }
  func.func @transform_3(%arg0: i32) -> (i32, i32, i32) {
    %c0_i32 = arith.constant 0 : i32
    %c0_i32_0 = arith.constant 0 : i32
    %c0_i32_1 = arith.constant 0 : i32
    %c0_i32_2 = arith.constant 0 : i32
    return %c0_i32, %c0_i32_0, %c0_i32_1 : i32, i32, i32
  }
  func.func @transform_4(%arg0: i32) -> (i32, i32, i32) {
    %c0_i32 = arith.constant 0 : i32
    %c0_i32_0 = arith.constant 0 : i32
    %c0_i32_1 = arith.constant 0 : i32
    return %arg0, %c0_i32, %c0_i32_0 : i32, i32, i32
  }
}

</mosaic_0001>

<llo_original>
// kernel: tpu_custom_call.1
$region0: #{tpu_custom_call.1}
  #allocation0 [shape = 'u32[]', space=smem, size = 0x4, offset = 0x4, fixed_abs, tag = 'smem constant byte address 0x4 - core index']
  #allocation1 [shape = 'u32[144,128]{1,0:T(1,128)}', space=vmem, size = 0x12000, scoped, tag = 'internal scratch']
  #allocation2 [shape = 'f32[16,384]{1,0:T(8,128)}', space=vmem, size = 0x6000, scoped, tag = 'scratch operand']
  %s0 = inlined_call_operand.hbm [shape: f32[2,4,256], index: 0, kind: input, shape index: {}]
  %s1 = inlined_call_operand.hbm [shape: f32[4,4], index: 1, kind: input, shape index: {}]
  %s2 = inlined_call_operand.vmem [shape: f32[4,4], index: 2, kind: input, shape index: {}]
  %s3 = inlined_call_operand.hbm [shape: f32[9,4,16], index: 3, kind: input, shape index: {}]
  %s4 = inlined_call_operand.hbm [shape: f32[2,4,256], index: 4, kind: output, shape index: {}]
  %s5 = sld [smem:[#allocation0]]
  $region61: #{tpu_custom_call.1} parent=0
    _
  %s7 = ssub.s32 1, %s5
  %s8 = scalar_select 0, %s7, %s5
  $region1: #{tpu_custom_call.1} parent=0
    #allocation3 [shape = 'u8[8192]{0}', space=vmem, size = 0x2000, scoped, tag = 'input window, operand 0']
    #allocation4 [shape = 's32[2]{0}', space=sflag, size = 0x8, scoped, tag = 'scoped memory for tpu_custom_call.1']
    #allocation5 [shape = 's32[2]{0}', space=sflag, size = 0x8, scoped, tag = 'scoped memory for tpu_custom_call.1']
    #allocation6 [shape = 'u8[2048]{0}', space=vmem, size = 0x800, scoped, tag = 'input window, operand 1, single buffered']
    #allocation7 [shape = 's32[1]{0}', space=sflag, size = 0x4, scoped, tag = 'scoped memory for tpu_custom_call.1']
    #allocation8 [shape = 'u8[18432]{0}', space=vmem, size = 0x4800, scoped, tag = 'input window, operand 3, single buffered']
    #allocation9 [shape = 'u8[8192]{0}', space=vmem, size = 0x2000, scoped, tag = 'output window, operand 0']
    %9 = vsyncpa [#allocation4], 0
    %s10 = scalar_lea.sflag [#allocation4], 1
    %11 = vsyncpa %s10, 0
    %12 = vsyncpa [#allocation7], 0
    %13 = vsyncpa [#allocation5], 0
    %s14 = scalar_lea.sflag [#allocation5], 1
    %15 = vsyncpa %s14, 0
    loop: start=0, step=1, limit=4
    $region2: #{tpu_custom_call.1} parent=1 // loop_pre_header
      _
    $region3: #{tpu_custom_call.1} parent=1 // loop_header
      %s17 = sphi 0, %s21
      %p18 = scmp.ge.s32.totalorder %s17, 4
      %s27 = sphi 0, %s29
      %s30 = sphi 0, %s27
      %s31 = sphi 0, %s30
      %s47 = sphi 0, %s31
      %s51 = sphi 0, %s51
      %s53 = sphi 0, %s51
      %s54 = sphi 0, %s53
      %s68 = sphi 0, %s54
      %s72 = sphi 0, %s72
      %s74 = sphi 0, %s72
      %s75 = sphi 0, %s74
      %s89 = sphi 0, %s75
      %s93 = sphi 0, %s93
      %s95 = sphi 0, %s93
      %s96 = sphi 0, %s95
      %s110 = sphi 0, %s96
      %s116 = sphi 0, %s118
      %s119 = sphi 0, %s116
      %s120 = sphi 0, %s119
      %s136 = sphi 0, %s120
    $region4: #{tpu_custom_call.1} parent=1 // loop_header_branch
      %20 = sbr.rel (%p18) target = $region8
    $region5: #{tpu_custom_call.1} parent=1 // loop_body
      %s22 = ssub.s32 %s17, 1
      %s23 = ssub.s32 %s17, 2
      %s24 = sadd.s32 %s17, 1
      %s25 = ssub.s32 %s17, %s24
      %p26 = scmp.eq.s32.totalorder %s25, 0
      %s28 = sadd.s32 %s27, 1
      %s29 = scalar_select %p26, %s27, %s28
      %p32 = pneg %p26
      %p33 = scmp.eq.s32.totalorder %s17, 1
      %p34 = por %p32, %p33
      %p35 = scmp.ne.s32.totalorder %s27, %s30
      %p36 = scmp.eq.s32.totalorder %s17, 0
      %p37 = por %p35, %p36
      %p38 = scmp.ne.s32.totalorder %s27, %s30
      %p39 = scmp.eq.s32.totalorder %s22, 1
      %p40 = por %p38, %p39
      %p41 = scmp.ne.s32.totalorder %s30, %s31
      %p42 = scmp.eq.s32.totalorder %s22, 0
      %p43 = por %p41, %p42
      %p44 = scmp.ne.s32.totalorder %s30, %s31
      %p45 = scmp.eq.s32.totalorder %s23, 1
      %p46 = por %p44, %p45
      %p48 = scmp.ne.s32.totalorder %s31, %s47
      %p49 = scmp.eq.s32.totalorder %s23, 0
      %p50 = por %p48, %p49
      %s52 = sadd.s32 %s51, 1
      %p55 = scmp.eq.s32.totalorder %s17, 1
      %p56 = scmp.ne.s32.totalorder %s51, %s53
      %p57 = scmp.eq.s32.totalorder %s17, 0
      %p58 = por %p56, %p57
      %p59 = scmp.ne.s32.totalorder %s51, %s53
      %p60 = scmp.eq.s32.totalorder %s22, 1
      %p61 = por %p59, %p60
      %p62 = scmp.ne.s32.totalorder %s53, %s54
      %p63 = scmp.eq.s32.totalorder %s22, 0
      %p64 = por %p62, %p63
      %p65 = scmp.ne.s32.totalorder %s53, %s54
      %p66 = scmp.eq.s32.totalorder %s23, 1
      %p67 = por %p65, %p66
      %p69 = scmp.ne.s32.totalorder %s54, %s68
      %p70 = scmp.eq.s32.totalorder %s23, 0
      %p71 = por %p69, %p70
      %s73 = sadd.s32 %s72, 1
      %p76 = scmp.eq.s32.totalorder %s17, 1
      %p77 = scmp.ne.s32.totalorder %s72, %s74
      %p78 = scmp.eq.s32.totalorder %s17, 0
      %p79 = por %p77, %p78
      %p80 = scmp.ne.s32.totalorder %s72, %s74
      %p81 = scmp.eq.s32.totalorder %s22, 1
      %p82 = por %p80, %p81
      %p83 = scmp.ne.s32.totalorder %s74, %s75
      %p84 = scmp.eq.s32.totalorder %s22, 0
      %p85 = por %p83, %p84
      %p86 = scmp.ne.s32.totalorder %s74, %s75
      %p87 = scmp.eq.s32.totalorder %s23, 1
      %p88 = por %p86, %p87
      %p90 = scmp.ne.s32.totalorder %s75, %s89
      %p91 = scmp.eq.s32.totalorder %s23, 0
      %p92 = por %p90, %p91
      %s94 = sadd.s32 %s93, 1
      %p97 = scmp.eq.s32.totalorder %s17, 1
      %p98 = scmp.ne.s32.totalorder %s93, %s95
      %p99 = scmp.eq.s32.totalorder %s17, 0
      %p100 = por %p98, %p99
      %p101 = scmp.ne.s32.totalorder %s93, %s95
      %p102 = scmp.eq.s32.totalorder %s22, 1
      %p103 = por %p101, %p102
      %p104 = scmp.ne.s32.totalorder %s95, %s96
      %p105 = scmp.eq.s32.totalorder %s22, 0
      %p106 = por %p104, %p105
      %p107 = scmp.ne.s32.totalorder %s95, %s96
      %p108 = scmp.eq.s32.totalorder %s23, 1
      %p109 = por %p107, %p108
      %p111 = scmp.ne.s32.totalorder %s96, %s110
      %p112 = scmp.eq.s32.totalorder %s23, 0
      %p113 = por %p111, %p112
      %s114 = ssub.s32 %s17, %s24
      %p115 = scmp.eq.s32.totalorder %s114, 0
      %s117 = sadd.s32 %s116, 1
      %s118 = scalar_select %p115, %s116, %s117
      %p121 = pneg %p115
      %p122 = scmp.eq.s32.totalorder %s17, 1
      %p123 = por %p121, %p122
      %p124 = scmp.ne.s32.totalorder %s116, %s119
      %p125 = scmp.eq.s32.totalorder %s17, 0
      %p126 = por %p124, %p125
      %p127 = scmp.ne.s32.totalorder %s116, %s119
      %p128 = scmp.eq.s32.totalorder %s22, 1
      %p129 = por %p127, %p128
      %p130 = scmp.ne.s32.totalorder %s119, %s120
      %p131 = scmp.eq.s32.totalorder %s22, 0
      %p132 = por %p130, %p131
      %p133 = scmp.ne.s32.totalorder %s119, %s120
      %p134 = scmp.eq.s32.totalorder %s23, 1
      %p135 = por %p133, %p134
      %p137 = scmp.ne.s32.totalorder %s120, %s136
      %p138 = scmp.eq.s32.totalorder %s23, 0
      %p139 = por %p137, %p138
      %p140 = scmp.le.s32.totalorder 1, %s17
      %p141 = scmp.lt.s32.totalorder %s17, 3
      %p142 = pnand %p140, %p141
      %p143 = pneg %p142
      // Predicated region
      $region9: #{tpu_custom_call.1} parent=5 // pred_check
        _
      $region10: #{tpu_custom_call.1} parent=5 // pred_check_branch
        %145 = sbr.rel (%p142) target = $region12
      $region11: #{tpu_custom_call.1} parent=5 // pred_region
        %s146 = ssub.s32 %s17, 1
        // Predicated region
        $region13: #{tpu_custom_call.1} parent=11 // pred_check
          %p147 = pneg %p64
        $region14: #{tpu_custom_call.1} parent=11 // pred_check_branch
          %149 = sbr.rel (%p147) target = $region16
        $region15: #{tpu_custom_call.1} parent=11 // pred_region
          %s151 = ssub.s32 64, 64
          %152 = vsyncadd [#allocation7], %s151
          %s154 = sshll.u32 [#allocation6], 4
          %s155 = int_to_ptr.vmem [resolvable:$true] %s154
          %157 = dma.hbm_to_vmem [thread:$0]  %s1, 64, %s155, [#allocation7]
        $region16: #{tpu_custom_call.1} parent=11 // pred_fallthru
          _
        // Predicated region
        $region17: #{tpu_custom_call.1} parent=11 // pred_check
          %p158 = pneg %p85
        $region18: #{tpu_custom_call.1} parent=11 // pred_check_branch
          %160 = sbr.rel (%p158) target = $region20
        $region19: #{tpu_custom_call.1} parent=11 // pred_region
          _
        $region20: #{tpu_custom_call.1} parent=11 // pred_fallthru
          _
        // Predicated region
        $region21: #{tpu_custom_call.1} parent=11 // pred_check
          %p161 = pneg %p106
        $region22: #{tpu_custom_call.1} parent=11 // pred_check_branch
          %163 = sbr.rel (%p161) target = $region24
        $region23: #{tpu_custom_call.1} parent=11 // pred_region
          %s165 = ssub.s32 576, 576
          %166 = vsyncadd [#allocation7], %s165
          %s167 = sshll.u32 [#allocation8], 4
          %s168 = int_to_ptr.vmem [resolvable:$true] %s167
          %173 = dma.hbm_to_vmem [thread:$0]  %s3, 576, %s168, [#allocation7], 64, 64, 4
        $region24: #{tpu_custom_call.1} parent=11 // pred_fallthru
          _
      $region12: #{tpu_custom_call.1} parent=5 // pred_fallthru
        _
      %p174 = scmp.lt.s32.totalorder %s17, 2
      // Predicated region
      $region25: #{tpu_custom_call.1} parent=5 // pred_check
        %p175 = pneg %p174
      $region26: #{tpu_custom_call.1} parent=5 // pred_check_branch
        %177 = sbr.rel (%p175) target = $region28
      $region27: #{tpu_custom_call.1} parent=5 // pred_region
        // Predicated region
        $region29: #{tpu_custom_call.1} parent=27 // pred_check
          %p178 = pneg %p37
        $region30: #{tpu_custom_call.1} parent=27 // pred_check_branch
          %180 = sbr.rel (%p178) target = $region32
        $region31: #{tpu_custom_call.1} parent=27 // pred_region
          %s181 = sand.u32 %s27, 1
          %s182 = scalar_lea.sflag [#allocation4], %s181
          %s183 = sand.u32 %s27, 1
          %s184 = smul.addr %s183, 8
          %s185 = scalar_lea.vmem [#allocation3], %s184
          %s187 = ssub.s32 128, 128
          %188 = vsyncadd %s182, %s187
          %s189 = smul.addr %s17, 2
          %s190 = smul.addr %s189, 64
          %s191 = scalar_lea.hbm %s0, %s190
          %s193 = sshll.u32 %s185, 4
          %s194 = int_to_ptr.vmem [resolvable:$true] %s193
          %196 = dma.hbm_to_vmem [thread:$0]  %s191, 128, %s194, %s182
        $region32: #{tpu_custom_call.1} parent=27 // pred_fallthru
          _
      $region28: #{tpu_custom_call.1} parent=5 // pred_fallthru
        _
      %p197 = scmp.le.s32.totalorder 1, %s17
      %p198 = scmp.lt.s32.totalorder %s17, 3
      %p199 = pnand %p197, %p198
      %p200 = pneg %p199
      // Predicated region
      $region33: #{tpu_custom_call.1} parent=5 // pred_check
        _
      $region34: #{tpu_custom_call.1} parent=5 // pred_check_branch
        %202 = sbr.rel (%p199) target = $region36
      $region35: #{tpu_custom_call.1} parent=5 // pred_region
        %s203 = ssub.s32 %s17, 1
        %s204 = sand.u32 %s30, 1
        %s205 = scalar_lea.sflag [#allocation4], %s204
        %s206 = sand.u32 %s30, 1
        %s207 = smul.addr %s206, 8
        %s208 = scalar_lea.vmem [#allocation3], %s207
        // Predicated region
        $region37: #{tpu_custom_call.1} parent=35 // pred_check
          %p209 = pneg %p43
        $region38: #{tpu_custom_call.1} parent=35 // pred_check_branch
          %211 = sbr.rel (%p209) target = $region40
        $region39: #{tpu_custom_call.1} parent=35 // pred_region
          %212 = dma.done %s205, 128
        $region40: #{tpu_custom_call.1} parent=35 // pred_fallthru
          _
        // Predicated region
        $region41: #{tpu_custom_call.1} parent=35 // pred_check
          %p213 = pneg %p64
        $region42: #{tpu_custom_call.1} parent=35 // pred_check_branch
          %215 = sbr.rel (%p213) target = $region44
        $region43: #{tpu_custom_call.1} parent=35 // pred_region
          %216 = dma.done [#allocation7], 64
        $region44: #{tpu_custom_call.1} parent=35 // pred_fallthru
          _
        // Predicated region
        $region45: #{tpu_custom_call.1} parent=35 // pred_check
          %p217 = pneg %p106
        $region46: #{tpu_custom_call.1} parent=35 // pred_check_branch
          %219 = sbr.rel (%p217) target = $region48
        $region47: #{tpu_custom_call.1} parent=35 // pred_region
          %220 = dma.done [#allocation7], 576
        $region48: #{tpu_custom_call.1} parent=35 // pred_fallthru
          _
        %s221 = sand.u32 %s30, 1
        %s222 = scalar_lea.sflag [#allocation4], %s221
        %s223 = sand.u32 %s30, 1
        %s224 = smul.addr %s223, 8
        %s225 = scalar_lea.vmem [#allocation3], %s224
        %p226 = pneg %p43
        %p227 = pneg %p40
        %p228 = pneg %p64
        %p229 = pneg %p61
        %p230 = pneg %p85
        %p231 = pneg %p82
        %p232 = pneg %p106
        %p233 = pneg %p103
        %p234 = pneg %p132
        %p235 = pneg %p129
        %s236 = sand.u32 %s119, 1
        %s237 = scalar_lea.sflag [#allocation5], %s236
        %s238 = sand.u32 %s119, 1
        %s239 = smul.addr %s238, 8
        %s240 = scalar_lea.vmem [#allocation9], %s239
        %241 = vst [vmem:[#allocation2 + $0x10] sm:$0xff] 0.0
        %242 = vst [vmem:[#allocation2 + $0x28] sm:$0xff] 0.0
        %v243 = vld [vmem:[#allocation6] sm:$0xf]
        %v244 = vlaneseq
        %v245 = vshrl.u32 %v244, 7
        %v246 = vsub.s32 0, %v245
        %v247 = vrot.slane %v243, %v246
        %249 = vbcast.lane.b32.xlu0 %v247, 256
        %v250 = vpop.permute.xlu0 %249
        %v251 = vlaneseq
        %v252 = vshrl.u32 %v251, 7
        %v253 = vsub.s32 1, %v252
        %v254 = vrot.slane %v243, %v253
        %256 = vbcast.lane.b32.xlu0 %v254, 256
        %v257 = vpop.permute.xlu0 %256
        %v258 = vlaneseq
        %v259 = vshrl.u32 %v258, 7
        %v260 = vsub.s32 2, %v259
        %v261 = vrot.slane %v243, %v260
        %263 = vbcast.lane.b32.xlu0 %v261, 256
        %v264 = vpop.permute.xlu0 %263
        %v265 = vlaneseq
        %v266 = vshrl.u32 %v265, 7
        %v267 = vsub.s32 3, %v266
        %v268 = vrot.slane %v243, %v267
        %270 = vbcast.lane.b32.xlu0 %v268, 256
        %v271 = vpop.permute.xlu0 %270
        %v272 = vld [vmem:[%s2] sm:$0xf]
        %v273 = vlaneseq
        %v274 = vshrl.u32 %v273, 7
        %v275 = vsub.s32 0, %v274
        %v276 = vrot.slane %v272, %v275
        %278 = vbcast.lane.b32.xlu0 %v276, 256
        %v279 = vpop.permute.xlu0 %278
        %v280 = vlaneseq
        %v281 = vshrl.u32 %v280, 7
        %v282 = vsub.s32 1, %v281
        %v283 = vrot.slane %v272, %v282
        %285 = vbcast.lane.b32.xlu0 %v283, 256
        %v286 = vpop.permute.xlu0 %285
        %v287 = vlaneseq
        %v288 = vshrl.u32 %v287, 7
        %v289 = vsub.s32 2, %v288
        %v290 = vrot.slane %v272, %v289
        %292 = vbcast.lane.b32.xlu0 %v290, 256
        %v293 = vpop.permute.xlu0 %292
        %v294 = vlaneseq
        %v295 = vshrl.u32 %v294, 7
        %v296 = vsub.s32 3, %v295
        %v297 = vrot.slane %v272, %v296
        %299 = vbcast.lane.b32.xlu0 %v297, 256
        %v300 = vpop.permute.xlu0 %299
        %v301 = vld [vmem:[#allocation8] sm:$0xf]
        %v302 = vld [vmem:[#allocation8 + $0x4] sm:$0xf]
        %v303 = vld [vmem:[#allocation8 + $0x8] sm:$0xf]
        %v304 = vld [vmem:[#allocation8 + $0xc] sm:$0xf]
        %v305 = vld [vmem:[#allocation8 + $0x10] sm:$0xf]
        %v306 = vld [vmem:[#allocation8 + $0x14] sm:$0xf]
        %v307 = vld [vmem:[#allocation8 + $0x18] sm:$0xf]
        %v308 = vld [vmem:[#allocation8 + $0x1c] sm:$0xf]
        %v309 = vld [vmem:[#allocation8 + $0x20] sm:$0xf]
        %v310 = vld [vmem:[%s208] sm:$0xff]
        %v316 = vunpack.c.l.s4 839922192
        %v317 = vunpack.c.0.s8 %v316
        %v318 = vlaneseq
        %v319 = vshrl.u32 %v318, 7
        %v320 = vsub.s32 %v317, %v319
        %v321 = vrot.slane %v250, %v320
        %v323 = vunpack.c.l.s4 839922192
        %v324 = vunpack.c.0.s8 %v323
        %v325 = vlaneseq
        %v326 = vshrl.u32 %v325, 7
        %v327 = vsub.s32 %v324, %v326
        %v328 = vrot.slane %v257, %v327
        %v330 = vunpack.c.l.s4 839922192
        %v331 = vunpack.c.0.s8 %v330
        %v332 = vlaneseq
        %v333 = vshrl.u32 %v332, 7
        %v334 = vsub.s32 %v331, %v333
        %v335 = vrot.slane %v264, %v334
        %v337 = vunpack.c.l.s4 839922192
        %v338 = vunpack.c.0.s8 %v337
        %v339 = vlaneseq
        %v340 = vshrl.u32 %v339, 7
        %v341 = vsub.s32 %v338, %v340
        %v342 = vrot.slane %v271, %v341
        %v347 = vsub.f32 %v310, %v321
        %v348 = vsub.f32 %v310, %v328
        %v349 = vsub.f32 %v310, %v335
        %v350 = vsub.f32 %v310, %v342
        %v356 = vunpack.c.l.s4 839922192
        %v357 = vunpack.c.0.s8 %v356
        %v358 = vlaneseq
        %v359 = vshrl.u32 %v358, 7
        %v360 = vsub.s32 %v357, %v359
        %v361 = vrot.slane %v279, %v360
        %v363 = vunpack.c.l.s4 839922192
        %v364 = vunpack.c.0.s8 %v363
        %v365 = vlaneseq
        %v366 = vshrl.u32 %v365, 7
        %v367 = vsub.s32 %v364, %v366
        %v368 = vrot.slane %v286, %v367
        %v370 = vunpack.c.l.s4 839922192
        %v371 = vunpack.c.0.s8 %v370
        %v372 = vlaneseq
        %v373 = vshrl.u32 %v372, 7
        %v374 = vsub.s32 %v371, %v373
        %v375 = vrot.slane %v293, %v374
        %v377 = vunpack.c.l.s4 839922192
        %v378 = vunpack.c.0.s8 %v377
        %v379 = vlaneseq
        %v380 = vshrl.u32 %v379, 7
        %v381 = vsub.s32 %v378, %v380
        %v382 = vrot.slane %v300, %v381
        %v387 = vmul.f32 %v347, %v361
        %v388 = vmul.f32 %v348, %v368
        %v389 = vmul.f32 %v349, %v375
        %v390 = vmul.f32 %v350, %v382
        %v391 = vmul.f32 %v387, %v387
        %v392 = vmul.f32 %v388, %v388
        %v393 = vmul.f32 %v389, %v389
        %v394 = vmul.f32 %v390, %v390
        %v395 = vsub.f32 %v391, 1.0
        %v396 = vsub.f32 %v392, 1.0
        %v397 = vsub.f32 %v393, 1.0
        %v398 = vsub.f32 %v394, 1.0
        %v399 = vmul.f32 %v391, -0.5
        %v400 = vmul.f32 %v392, -0.5
        %v401 = vmul.f32 %v393, -0.5
        %v402 = vmul.f32 %v394, -0.5
        %v403 = vmul.f32 %v399, 1.442695
        %v404 = vpow.pop %v403
        %v405 = vmul.f32 %v400, 1.442695
        %v406 = vpow.pop %v405
        %v407 = vmul.f32 %v401, 1.442695
        %v408 = vpow.pop %v407
        %v409 = vmul.f32 %v402, 1.442695
        %v410 = vpow.pop %v409
        %v411 = vmul.f32 %v395, %v404
        %v412 = vmul.f32 %v396, %v406
        %v413 = vmul.f32 %v397, %v408
        %v414 = vmul.f32 %v398, %v410
        %v419 = vcombine.low %v411, %v412
        %v420 = vcombine.high %v411, %v412
        %v421 = vcombine.low %v413, %v414
        %v422 = vcombine.high %v413, %v414
        %427 = vst [vmem:[#allocation2] sm:$0xff] %v419
        %428 = vst [vmem:[#allocation2 + $0x8] sm:$0xff] %v420
        %429 = vst [vmem:[#allocation2 + $0x18] sm:$0xff] %v421
        %430 = vst [vmem:[#allocation2 + $0x20] sm:$0xff] %v422
        %v431 = vld [vmem:[#allocation2] sm:$0xff]
        %v432 = vld [vmem:[#allocation2 + $0x8] sm:$0xff]
        %v433 = vld [vmem:[#allocation2 + $0x18] sm:$0xff]
        %v434 = vld [vmem:[#allocation2 + $0x20] sm:$0xff]
        %v435 = vld [vmem:[#allocation2] sm:$0xff]
        %v436 = vld [vmem:[#allocation2 + $0x8] sm:$0xff]
        %v437 = vld [vmem:[#allocation2 + $0x10] sm:$0xff]
        %v438 = vld [vmem:[#allocation2 + $0x18] sm:$0xff]
        %v439 = vld [vmem:[#allocation2 + $0x20] sm:$0xff]
        %v440 = vld [vmem:[#allocation2 + $0x28] sm:$0xff]
        %447 = vrot.lane.b32.xlu0 %v435, 127
        %v448 = vpop.permute.xlu0 %447
        %449 = vrot.lane.b32.xlu0 %v436, 127
        %v450 = vpop.permute.xlu0 %449
        %451 = vrot.lane.b32.xlu0 %v437, 127
        %v452 = vpop.permute.xlu0 %451
        %453 = vrot.lane.b32.xlu0 %v438, 127
        %v454 = vpop.permute.xlu0 %453
        %455 = vrot.lane.b32.xlu0 %v439, 127
        %v456 = vpop.permute.xlu0 %455
        %457 = vrot.lane.b32.xlu0 %v440, 127
        %v458 = vpop.permute.xlu0 %457
        %vm459 = vcmask 1039360
        %v460 = vsel %vm459, %v448, %v450
        %v461 = vsel %vm459, %v450, %v452
        %v462 = vsel %vm459, %v454, %v456
        %v463 = vsel %vm459, %v456, %v458
        %vm468 = vcmask 130048
        %v470 = vsel %vm468, %v302, 0
        %472 = vmatprep.subr.mxu0 %v461
        %473 = vmatpush1.msra.mxu0 %v460
        %474 = vmatprep.subr.mxu0 %v463
        %475 = vmatpush1.msra.mxu0 %v462
        %476 = vmatprep.subr.mxu0 0.0
        %477 = vmatpush1.msra.mxu0 0.0
        %478 = vmatprep.subr.mxu0 0.0
        %479 = vmatpush1.msra.mxu0 0.0
        %480 = vmatprep.subr.mxu0 0.0
        %481 = vmatpush1.msra.mxu0 0.0
        %482 = vmatprep.subr.mxu0 0.0
        %483 = vmatpush1.msra.mxu0 0.0
        %484 = vmatprep.subr.mxu0 0.0
        %485 = vmatpush1.msra.mxu0 0.0
        %486 = vmatprep.subr.mxu0 0.0
        %487 = vmatpush1.msra.mxu0 0.0
        %488 = vmatprep.subr.mxu0 0.0
        %489 = vmatpush1.msra.mxu0 0.0
        %490 = vmatprep.subr.mxu0 0.0
        %491 = vmatpush1.msra.mxu0 0.0
        %492 = vmatprep.subr.mxu0 0.0
        %493 = vmatpush1.msra.mxu0 0.0
        %494 = vmatprep.subr.mxu0 0.0
        %495 = vmatpush1.msra.mxu0 0.0
        %496 = vmatprep.subr.mxu0 0.0
        %497 = vmatpush1.msra.mxu0 0.0
        %498 = vmatprep.subr.mxu0 0.0
        %499 = vmatpush1.msra.mxu0 0.0
        %500 = vmatprep.subr.mxu0 0.0
        %501 = vmatpush1.msra.mxu0 0.0
        %502 = vmatprep.subr.mxu0 0.0
        %503 = vmatpush1.msra.mxu0 0.0
        %504 = vmatprep.subr.mxu0 0.0
        %505 = vmatpush1.msra.mxu0 0.0
        %506 = vmatprep.subr.mxu0 0.0
        %507 = vmatpush1.msra.mxu0 0.0
        %508 = vmatprep.subr.mxu0 0.0
        %509 = vmatpush1.msra.mxu0 0.0
        %510 = vmatprep.subr.mxu0 0.0
        %511 = vmatpush1.msra.mxu0 0.0
        %512 = vmatprep.subr.mxu0 0.0
        %513 = vmatpush1.msra.mxu0 0.0
        %514 = vmatprep.subr.mxu0 0.0
        %515 = vmatpush1.msra.mxu0 0.0
        %516 = vmatprep.subr.mxu0 0.0
        %517 = vmatpush1.msra.mxu0 0.0
        %518 = vmatprep.subr.mxu0 0.0
        %519 = vmatpush1.msra.mxu0 0.0
        %520 = vmatprep.subr.mxu0 0.0
        %521 = vmatpush1.msra.mxu0 0.0
        %522 = vmatprep.subr.mxu0 0.0
        %523 = vmatpush1.msra.mxu0 0.0
        %524 = vmatprep.subr.mxu0 0.0
        %525 = vmatpush1.msra.mxu0 0.0
        %526 = vmatprep.subr.mxu0 0.0
        %527 = vmatpush1.msra.mxu0 0.0
        %528 = vmatprep.subr.mxu0 0.0
        %529 = vmatpush1.msra.mxu0 0.0
        %530 = vmatprep.subr.mxu0 0.0
        %531 = vmatpush1.msra.mxu0 0.0
        %532 = vmatprep.subr.mxu0 0.0
        %533 = vmatpush1.msra.mxu0 0.0
        %534 = vmatprep.subr.mxu0 0.0
        %535 = vmatpush1.msra.mxu0 0.0
        %536 = vmatprep.mubr.f32.mxu0 0.0
        %537 = vmatmul.mubr.f32.gmra.mrb[0].mxu0 %v470
        %v538 = vpop.f32.mrb[0].mxu0
        %v539 = vadd.f32 0.0, %v538
        %v540 = vpop.f32.mrb[0].mxu0
        %v541 = vadd.f32 0.0, %v540
        %542 = vdwg.mxu0
        %v544 = vsel %vm468, %v301, 0
        %546 = vmatprep.subr.mxu0 %v432
        %547 = vmatpush1.msra.mxu0 %v431
        %548 = vmatprep.subr.mxu0 %v434
        %549 = vmatpush1.msra.mxu0 %v433
        %550 = vmatprep.subr.mxu0 0.0
        %551 = vmatpush1.msra.mxu0 0.0
        %552 = vmatprep.subr.mxu0 0.0
        %553 = vmatpush1.msra.mxu0 0.0
        %554 = vmatprep.subr.mxu0 0.0
        %555 = vmatpush1.msra.mxu0 0.0
        %556 = vmatprep.subr.mxu0 0.0
        %557 = vmatpush1.msra.mxu0 0.0
        %558 = vmatprep.subr.mxu0 0.0
        %559 = vmatpush1.msra.mxu0 0.0
        %560 = vmatprep.subr.mxu0 0.0
        %561 = vmatpush1.msra.mxu0 0.0
        %562 = vmatprep.subr.mxu0 0.0
        %563 = vmatpush1.msra.mxu0 0.0
        %564 = vmatprep.subr.mxu0 0.0
        %565 = vmatpush1.msra.mxu0 0.0
        %566 = vmatprep.subr.mxu0 0.0
        %567 = vmatpush1.msra.mxu0 0.0
        %568 = vmatprep.subr.mxu0 0.0
        %569 = vmatpush1.msra.mxu0 0.0
        %570 = vmatprep.subr.mxu0 0.0
        %571 = vmatpush1.msra.mxu0 0.0
        %572 = vmatprep.subr.mxu0 0.0
        %573 = vmatpush1.msra.mxu0 0.0
        %574 = vmatprep.subr.mxu0 0.0
        %575 = vmatpush1.msra.mxu0 0.0
        %576 = vmatprep.subr.mxu0 0.0
        %577 = vmatpush1.msra.mxu0 0.0
        %578 = vmatprep.subr.mxu0 0.0
        %579 = vmatpush1.msra.mxu0 0.0
        %580 = vmatprep.subr.mxu0 0.0
        %581 = vmatpush1.msra.mxu0 0.0
        %582 = vmatprep.subr.mxu0 0.0
        %583 = vmatpush1.msra.mxu0 0.0
        %584 = vmatprep.subr.mxu0 0.0
        %585 = vmatpush1.msra.mxu0 0.0
        %586 = vmatprep.subr.mxu0 0.0
        %587 = vmatpush1.msra.mxu0 0.0
        %588 = vmatprep.subr.mxu0 0.0
        %589 = vmatpush1.msra.mxu0 0.0
        %590 = vmatprep.subr.mxu0 0.0
        %591 = vmatpush1.msra.mxu0 0.0
        %592 = vmatprep.subr.mxu0 0.0
        %593 = vmatpush1.msra.mxu0 0.0
        %594 = vmatprep.subr.mxu0 0.0
        %595 = vmatpush1.msra.mxu0 0.0
        %596 = vmatprep.subr.mxu0 0.0
        %597 = vmatpush1.msra.mxu0 0.0
        %598 = vmatprep.subr.mxu0 0.0
        %599 = vmatpush1.msra.mxu0 0.0
        %600 = vmatprep.subr.mxu0 0.0
        %601 = vmatpush1.msra.mxu0 0.0
        %602 = vmatprep.subr.mxu0 0.0
        %603 = vmatpush1.msra.mxu0 0.0
        %604 = vmatprep.subr.mxu0 0.0
        %605 = vmatpush1.msra.mxu0 0.0
        %606 = vmatprep.subr.mxu0 0.0
        %607 = vmatpush1.msra.mxu0 0.0
        %608 = vmatprep.subr.mxu0 0.0
        %609 = vmatpush1.msra.mxu0 0.0
        %610 = vmatprep.mubr.f32.mxu0 0.0
        %611 = vmatmul.mubr.f32.gmra.mrb[0].mxu0 %v544
        %v612 = vpop.f32.mrb[0].mxu0
        %v613 = vadd.f32 %v539, %v612
        %v614 = vpop.f32.mrb[0].mxu0
        %v615 = vadd.f32 %v541, %v614
        %616 = vdwg.mxu0
        %617 = vrot.lane.b32.xlu0 %v435, 126
        %v618 = vpop.permute.xlu0 %617
        %619 = vrot.lane.b32.xlu0 %v436, 126
        %v620 = vpop.permute.xlu0 %619
        %621 = vrot.lane.b32.xlu0 %v437, 126
        %v622 = vpop.permute.xlu0 %621
        %623 = vrot.lane.b32.xlu0 %v438, 126
        %v624 = vpop.permute.xlu0 %623
        %625 = vrot.lane.b32.xlu0 %v439, 126
        %v626 = vpop.permute.xlu0 %625
        %627 = vrot.lane.b32.xlu0 %v440, 126
        %v628 = vpop.permute.xlu0 %627
        %vm629 = vcmask 1031168
        %v630 = vsel %vm629, %v618, %v620
        %v631 = vsel %vm629, %v620, %v622
        %v632 = vsel %vm629, %v624, %v626
        %v633 = vsel %vm629, %v626, %v628
        %v639 = vsel %vm468, %v303, 0
        %641 = vmatprep.subr.mxu0 %v631
        %642 = vmatpush1.msra.mxu0 %v630
        %643 = vmatprep.subr.mxu0 %v633
        %644 = vmatpush1.msra.mxu0 %v632
        %645 = vmatprep.subr.mxu0 0.0
        %646 = vmatpush1.msra.mxu0 0.0
        %647 = vmatprep.subr.mxu0 0.0
        %648 = vmatpush1.msra.mxu0 0.0
        %649 = vmatprep.subr.mxu0 0.0
        %650 = vmatpush1.msra.mxu0 0.0
        %651 = vmatprep.subr.mxu0 0.0
        %652 = vmatpush1.msra.mxu0 0.0
        %653 = vmatprep.subr.mxu0 0.0
        %654 = vmatpush1.msra.mxu0 0.0
        %655 = vmatprep.subr.mxu0 0.0
        %656 = vmatpush1.msra.mxu0 0.0
        %657 = vmatprep.subr.mxu0 0.0
        %658 = vmatpush1.msra.mxu0 0.0
        %659 = vmatprep.subr.mxu0 0.0
        %660 = vmatpush1.msra.mxu0 0.0
        %661 = vmatprep.subr.mxu0 0.0
        %662 = vmatpush1.msra.mxu0 0.0
        %663 = vmatprep.subr.mxu0 0.0
        %664 = vmatpush1.msra.mxu0 0.0
        %665 = vmatprep.subr.mxu0 0.0
        %666 = vmatpush1.msra.mxu0 0.0
        %667 = vmatprep.subr.mxu0 0.0
        %668 = vmatpush1.msra.mxu0 0.0
        %669 = vmatprep.subr.mxu0 0.0
        %670 = vmatpush1.msra.mxu0 0.0
        %671 = vmatprep.subr.mxu0 0.0
        %672 = vmatpush1.msra.mxu0 0.0
        %673 = vmatprep.subr.mxu0 0.0
        %674 = vmatpush1.msra.mxu0 0.0
        %675 = vmatprep.subr.mxu0 0.0
        %676 = vmatpush1.msra.mxu0 0.0
        %677 = vmatprep.subr.mxu0 0.0
        %678 = vmatpush1.msra.mxu0 0.0
        %679 = vmatprep.subr.mxu0 0.0
        %680 = vmatpush1.msra.mxu0 0.0
        %681 = vmatprep.subr.mxu0 0.0
        %682 = vmatpush1.msra.mxu0 0.0
        %683 = vmatprep.subr.mxu0 0.0
        %684 = vmatpush1.msra.mxu0 0.0
        %685 = vmatprep.subr.mxu0 0.0
        %686 = vmatpush1.msra.mxu0 0.0
        %687 = vmatprep.subr.mxu0 0.0
        %688 = vmatpush1.msra.mxu0 0.0
        %689 = vmatprep.subr.mxu0 0.0
        %690 = vmatpush1.msra.mxu0 0.0
        %691 = vmatprep.subr.mxu0 0.0
        %692 = vmatpush1.msra.mxu0 0.0
        %693 = vmatprep.subr.mxu0 0.0
        %694 = vmatpush1.msra.mxu0 0.0
        %695 = vmatprep.subr.mxu0 0.0
        %696 = vmatpush1.msra.mxu0 0.0
        %697 = vmatprep.subr.mxu0 0.0
        %698 = vmatpush1.msra.mxu0 0.0
        %699 = vmatprep.subr.mxu0 0.0
        %700 = vmatpush1.msra.mxu0 0.0
        %701 = vmatprep.subr.mxu0 0.0
        %702 = vmatpush1.msra.mxu0 0.0
        %703 = vmatprep.subr.mxu0 0.0
        %704 = vmatpush1.msra.mxu0 0.0
        %705 = vmatprep.mubr.f32.mxu0 0.0
        %706 = vmatmul.mubr.f32.gmra.mrb[0].mxu0 %v639
        %v707 = vpop.f32.mrb[0].mxu0
        %v708 = vadd.f32 0.0, %v707
        %v709 = vpop.f32.mrb[0].mxu0
        %v710 = vadd.f32 0.0, %v709
        %711 = vdwg.mxu0
        %v712 = vadd.f32 %v613, %v708
        %v713 = vadd.f32 %v615, %v710
        %714 = vrot.lane.b32.xlu0 %v435, 112
        %v715 = vpop.permute.xlu0 %714
        %716 = vrot.lane.b32.xlu0 %v436, 112
        %v717 = vpop.permute.xlu0 %716
        %718 = vrot.lane.b32.xlu0 %v437, 112
        %v719 = vpop.permute.xlu0 %718
        %720 = vrot.lane.b32.xlu0 %v438, 112
        %v721 = vpop.permute.xlu0 %720
        %722 = vrot.lane.b32.xlu0 %v439, 112
        %v723 = vpop.permute.xlu0 %722
        %724 = vrot.lane.b32.xlu0 %v440, 112
        %v725 = vpop.permute.xlu0 %724
        %vm726 = vcmask 916480
        %v727 = vsel %vm726, %v715, %v717
        %v728 = vsel %vm726, %v717, %v719
        %v729 = vsel %vm726, %v721, %v723
        %v730 = vsel %vm726, %v723, %v725
        %v736 = vsel %vm468, %v304, 0
        %738 = vmatprep.subr.mxu0 %v728
        %739 = vmatpush1.msra.mxu0 %v727
        %740 = vmatprep.subr.mxu0 %v730
        %741 = vmatpush1.msra.mxu0 %v729
        %742 = vmatprep.subr.mxu0 0.0
        %743 = vmatpush1.msra.mxu0 0.0
        %744 = vmatprep.subr.mxu0 0.0
        %745 = vmatpush1.msra.mxu0 0.0
        %746 = vmatprep.subr.mxu0 0.0
        %747 = vmatpush1.msra.mxu0 0.0
        %748 = vmatprep.subr.mxu0 0.0
        %749 = vmatpush1.msra.mxu0 0.0
        %750 = vmatprep.subr.mxu0 0.0
        %751 = vmatpush1.msra.mxu0 0.0
        %752 = vmatprep.subr.mxu0 0.0
        %753 = vmatpush1.msra.mxu0 0.0
        %754 = vmatprep.subr.mxu0 0.0
        %755 = vmatpush1.msra.mxu0 0.0
        %756 = vmatprep.subr.mxu0 0.0
        %757 = vmatpush1.msra.mxu0 0.0
        %758 = vmatprep.subr.mxu0 0.0
        %759 = vmatpush1.msra.mxu0 0.0
        %760 = vmatprep.subr.mxu0 0.0
        %761 = vmatpush1.msra.mxu0 0.0
        %762 = vmatprep.subr.mxu0 0.0
        %763 = vmatpush1.msra.mxu0 0.0
        %764 = vmatprep.subr.mxu0 0.0
        %765 = vmatpush1.msra.mxu0 0.0
        %766 = vmatprep.subr.mxu0 0.0
        %767 = vmatpush1.msra.mxu0 0.0
        %768 = vmatprep.subr.mxu0 0.0
        %769 = vmatpush1.msra.mxu0 0.0
        %770 = vmatprep.subr.mxu0 0.0
        %771 = vmatpush1.msra.mxu0 0.0
        %772 = vmatprep.subr.mxu0 0.0
        %773 = vmatpush1.msra.mxu0 0.0
        %774 = vmatprep.subr.mxu0 0.0
        %775 = vmatpush1.msra.mxu0 0.0
        %776 = vmatprep.subr.mxu0 0.0
        %777 = vmatpush1.msra.mxu0 0.0
        %778 = vmatprep.subr.mxu0 0.0
        %779 = vmatpush1.msra.mxu0 0.0
        %780 = vmatprep.subr.mxu0 0.0
        %781 = vmatpush1.msra.mxu0 0.0
        %782 = vmatprep.subr.mxu0 0.0
        %783 = vmatpush1.msra.mxu0 0.0
        %784 = vmatprep.subr.mxu0 0.0
        %785 = vmatpush1.msra.mxu0 0.0
        %786 = vmatprep.subr.mxu0 0.0
        %787 = vmatpush1.msra.mxu0 0.0
        %788 = vmatprep.subr.mxu0 0.0
        %789 = vmatpush1.msra.mxu0 0.0
        %790 = vmatprep.subr.mxu0 0.0
        %791 = vmatpush1.msra.mxu0 0.0
        %792 = vmatprep.subr.mxu0 0.0
        %793 = vmatpush1.msra.mxu0 0.0
        %794 = vmatprep.subr.mxu0 0.0
        %795 = vmatpush1.msra.mxu0 0.0
        %796 = vmatprep.subr.mxu0 0.0
        %797 = vmatpush1.msra.mxu0 0.0
        %798 = vmatprep.subr.mxu0 0.0
        %799 = vmatpush1.msra.mxu0 0.0
        %800 = vmatprep.subr.mxu0 0.0
        %801 = vmatpush1.msra.mxu0 0.0
        %802 = vmatprep.mubr.f32.mxu0 0.0
        %803 = vmatmul.mubr.f32.gmra.mrb[0].mxu0 %v736
        %v804 = vpop.f32.mrb[0].mxu0
        %v805 = vadd.f32 0.0, %v804
        %v806 = vpop.f32.mrb[0].mxu0
        %v807 = vadd.f32 0.0, %v806
        %808 = vdwg.mxu0
        %v809 = vadd.f32 %v712, %v805
        %v810 = vadd.f32 %v713, %v807
        %811 = vrot.lane.b32.xlu0 %v435, 111
        %v812 = vpop.permute.xlu0 %811
        %813 = vrot.lane.b32.xlu0 %v436, 111
        %v814 = vpop.permute.xlu0 %813
        %815 = vrot.lane.b32.xlu0 %v437, 111
        %v816 = vpop.permute.xlu0 %815
        %817 = vrot.lane.b32.xlu0 %v438, 111
        %v818 = vpop.permute.xlu0 %817
        %819 = vrot.lane.b32.xlu0 %v439, 111
        %v820 = vpop.permute.xlu0 %819
        %821 = vrot.lane.b32.xlu0 %v440, 111
        %v822 = vpop.permute.xlu0 %821
        %vm823 = vcmask 908288
        %v824 = vsel %vm823, %v812, %v814
        %v825 = vsel %vm823, %v814, %v816
        %v826 = vsel %vm823, %v818, %v820
        %v827 = vsel %vm823, %v820, %v822
        %v833 = vsel %vm468, %v305, 0
        %835 = vmatprep.subr.mxu0 %v825
        %836 = vmatpush1.msra.mxu0 %v824
        %837 = vmatprep.subr.mxu0 %v827
        %838 = vmatpush1.msra.mxu0 %v826
        %839 = vmatprep.subr.mxu0 0.0
        %840 = vmatpush1.msra.mxu0 0.0
        %841 = vmatprep.subr.mxu0 0.0
        %842 = vmatpush1.msra.mxu0 0.0
        %843 = vmatprep.subr.mxu0 0.0
        %844 = vmatpush1.msra.mxu0 0.0
        %845 = vmatprep.subr.mxu0 0.0
        %846 = vmatpush1.msra.mxu0 0.0
        %847 = vmatprep.subr.mxu0 0.0
        %848 = vmatpush1.msra.mxu0 0.0
        %849 = vmatprep.subr.mxu0 0.0
        %850 = vmatpush1.msra.mxu0 0.0
        %851 = vmatprep.subr.mxu0 0.0
        %852 = vmatpush1.msra.mxu0 0.0
        %853 = vmatprep.subr.mxu0 0.0
        %854 = vmatpush1.msra.mxu0 0.0
        %855 = vmatprep.subr.mxu0 0.0
        %856 = vmatpush1.msra.mxu0 0.0
        %857 = vmatprep.subr.mxu0 0.0
        %858 = vmatpush1.msra.mxu0 0.0
        %859 = vmatprep.subr.mxu0 0.0
        %860 = vmatpush1.msra.mxu0 0.0
        %861 = vmatprep.subr.mxu0 0.0
        %862 = vmatpush1.msra.mxu0 0.0
        %863 = vmatprep.subr.mxu0 0.0
        %864 = vmatpush1.msra.mxu0 0.0
        %865 = vmatprep.subr.mxu0 0.0
        %866 = vmatpush1.msra.mxu0 0.0
        %867 = vmatprep.subr.mxu0 0.0
        %868 = vmatpush1.msra.mxu0 0.0
        %869 = vmatprep.subr.mxu0 0.0
        %870 = vmatpush1.msra.mxu0 0.0
        %871 = vmatprep.subr.mxu0 0.0
        %872 = vmatpush1.msra.mxu0 0.0
        %873 = vmatprep.subr.mxu0 0.0
        %874 = vmatpush1.msra.mxu0 0.0
        %875 = vmatprep.subr.mxu0 0.0
        %876 = vmatpush1.msra.mxu0 0.0
        %877 = vmatprep.subr.mxu0 0.0
        %878 = vmatpush1.msra.mxu0 0.0
        %879 = vmatprep.subr.mxu0 0.0
        %880 = vmatpush1.msra.mxu0 0.0
        %881 = vmatprep.subr.mxu0 0.0
        %882 = vmatpush1.msra.mxu0 0.0
        %883 = vmatprep.subr.mxu0 0.0
        %884 = vmatpush1.msra.mxu0 0.0
        %885 = vmatprep.subr.mxu0 0.0
        %886 = vmatpush1.msra.mxu0 0.0
        %887 = vmatprep.subr.mxu0 0.0
        %888 = vmatpush1.msra.mxu0 0.0
        %889 = vmatprep.subr.mxu0 0.0
        %890 = vmatpush1.msra.mxu0 0.0
        %891 = vmatprep.subr.mxu0 0.0
        %892 = vmatpush1.msra.mxu0 0.0
        %893 = vmatprep.subr.mxu0 0.0
        %894 = vmatpush1.msra.mxu0 0.0
        %895 = vmatprep.subr.mxu0 0.0
        %896 = vmatpush1.msra.mxu0 0.0
        %897 = vmatprep.subr.mxu0 0.0
        %898 = vmatpush1.msra.mxu0 0.0
        %899 = vmatprep.mubr.f32.mxu0 0.0
        %900 = vmatmul.mubr.f32.gmra.mrb[0].mxu0 %v833
        %v901 = vpop.f32.mrb[0].mxu0
        %v902 = vadd.f32 0.0, %v901
        %v903 = vpop.f32.mrb[0].mxu0
        %v904 = vadd.f32 0.0, %v903
        %905 = vdwg.mxu0
        %v906 = vadd.f32 %v809, %v902
        %v907 = vadd.f32 %v810, %v904
        %908 = vrot.lane.b32.xlu0 %v435, 110
        %v909 = vpop.permute.xlu0 %908
        %910 = vrot.lane.b32.xlu0 %v436, 110
        %v911 = vpop.permute.xlu0 %910
        %912 = vrot.lane.b32.xlu0 %v437, 110
        %v913 = vpop.permute.xlu0 %912
        %914 = vrot.lane.b32.xlu0 %v438, 110
        %v915 = vpop.permute.xlu0 %914
        %916 = vrot.lane.b32.xlu0 %v439, 110
        %v917 = vpop.permute.xlu0 %916
        %918 = vrot.lane.b32.xlu0 %v440, 110
        %v919 = vpop.permute.xlu0 %918
        %vm920 = vcmask 900096
        %v921 = vsel %vm920, %v909, %v911
        %v922 = vsel %vm920, %v911, %v913
        %v923 = vsel %vm920, %v915, %v917
        %v924 = vsel %vm920, %v917, %v919
        %v930 = vsel %vm468, %v306, 0
        %932 = vmatprep.subr.mxu0 %v922
        %933 = vmatpush1.msra.mxu0 %v921
        %934 = vmatprep.subr.mxu0 %v924
        %935 = vmatpush1.msra.mxu0 %v923
        %936 = vmatprep.subr.mxu0 0.0
        %937 = vmatpush1.msra.mxu0 0.0
        %938 = vmatprep.subr.mxu0 0.0
        %939 = vmatpush1.msra.mxu0 0.0
        %940 = vmatprep.subr.mxu0 0.0
        %941 = vmatpush1.msra.mxu0 0.0
        %942 = vmatprep.subr.mxu0 0.0
        %943 = vmatpush1.msra.mxu0 0.0
        %944 = vmatprep.subr.mxu0 0.0
        %945 = vmatpush1.msra.mxu0 0.0
        %946 = vmatprep.subr.mxu0 0.0
        %947 = vmatpush1.msra.mxu0 0.0
        %948 = vmatprep.subr.mxu0 0.0
        %949 = vmatpush1.msra.mxu0 0.0
        %950 = vmatprep.subr.mxu0 0.0
        %951 = vmatpush1.msra.mxu0 0.0
        %952 = vmatprep.subr.mxu0 0.0
        %953 = vmatpush1.msra.mxu0 0.0
        %954 = vmatprep.subr.mxu0 0.0
        %955 = vmatpush1.msra.mxu0 0.0
        %956 = vmatprep.subr.mxu0 0.0
        %957 = vmatpush1.msra.mxu0 0.0
        %958 = vmatprep.subr.mxu0 0.0
        %959 = vmatpush1.msra.mxu0 0.0
        %960 = vmatprep.subr.mxu0 0.0
        %961 = vmatpush1.msra.mxu0 0.0
        %962 = vmatprep.subr.mxu0 0.0
        %963 = vmatpush1.msra.mxu0 0.0
        %964 = vmatprep.subr.mxu0 0.0
        %965 = vmatpush1.msra.mxu0 0.0
        %966 = vmatprep.subr.mxu0 0.0
        %967 = vmatpush1.msra.mxu0 0.0
        %968 = vmatprep.subr.mxu0 0.0
        %969 = vmatpush1.msra.mxu0 0.0
        %970 = vmatprep.subr.mxu0 0.0
        %971 = vmatpush1.msra.mxu0 0.0
        %972 = vmatprep.subr.mxu0 0.0
        %973 = vmatpush1.msra.mxu0 0.0
        %974 = vmatprep.subr.mxu0 0.0
        %975 = vmatpush1.msra.mxu0 0.0
        %976 = vmatprep.subr.mxu0 0.0
        %977 = vmatpush1.msra.mxu0 0.0
        %978 = vmatprep.subr.mxu0 0.0
        %979 = vmatpush1.msra.mxu0 0.0
        %980 = vmatprep.subr.mxu0 0.0
        %981 = vmatpush1.msra.mxu0 0.0
        %982 = vmatprep.subr.mxu0 0.0
        %983 = vmatpush1.msra.mxu0 0.0
        %984 = vmatprep.subr.mxu0 0.0
        %985 = vmatpush1.msra.mxu0 0.0
        %986 = vmatprep.subr.mxu0 0.0
        %987 = vmatpush1.msra.mxu0 0.0
        %988 = vmatprep.subr.mxu0 0.0
        %989 = vmatpush1.msra.mxu0 0.0
        %990 = vmatprep.subr.mxu0 0.0
        %991 = vmatpush1.msra.mxu0 0.0
        %992 = vmatprep.subr.mxu0 0.0
        %993 = vmatpush1.msra.mxu0 0.0
        %994 = vmatprep.subr.mxu0 0.0
        %995 = vmatpush1.msra.mxu0 0.0
        %996 = vmatprep.mubr.f32.mxu0 0.0
        %997 = vmatmul.mubr.f32.gmra.mrb[0].mxu0 %v930
        %v998 = vpop.f32.mrb[0].mxu0
        %v999 = vadd.f32 0.0, %v998
        %v1000 = vpop.f32.mrb[0].mxu0
        %v1001 = vadd.f32 0.0, %v1000
        %1002 = vdwg.mxu0
        %v1003 = vadd.f32 %v906, %v999
        %v1004 = vadd.f32 %v907, %v1001
        %1005 = vrot.lane.b32.xlu0 %v435, 96
        %v1006 = vpop.permute.xlu0 %1005
        %1007 = vrot.lane.b32.xlu0 %v436, 96
        %v1008 = vpop.permute.xlu0 %1007
        %1009 = vrot.lane.b32.xlu0 %v437, 96
        %v1010 = vpop.permute.xlu0 %1009
        %1011 = vrot.lane.b32.xlu0 %v438, 96
        %v1012 = vpop.permute.xlu0 %1011
        %1013 = vrot.lane.b32.xlu0 %v439, 96
        %v1014 = vpop.permute.xlu0 %1013
        %1015 = vrot.lane.b32.xlu0 %v440, 96
        %v1016 = vpop.permute.xlu0 %1015
        %vm1017 = vcmask 785408
        %v1018 = vsel %vm1017, %v1006, %v1008
        %v1019 = vsel %vm1017, %v1008, %v1010
        %v1020 = vsel %vm1017, %v1012, %v1014
        %v1021 = vsel %vm1017, %v1014, %v1016
        %v1027 = vsel %vm468, %v307, 0
        %1029 = vmatprep.subr.mxu0 %v1019
        %1030 = vmatpush1.msra.mxu0 %v1018
        %1031 = vmatprep.subr.mxu0 %v1021
        %1032 = vmatpush1.msra.mxu0 %v1020
        %1033 = vmatprep.subr.mxu0 0.0
        %1034 = vmatpush1.msra.mxu0 0.0
        %1035 = vmatprep.subr.mxu0 0.0
        %1036 = vmatpush1.msra.mxu0 0.0
        %1037 = vmatprep.subr.mxu0 0.0
        %1038 = vmatpush1.msra.mxu0 0.0
        %1039 = vmatprep.subr.mxu0 0.0
        %1040 = vmatpush1.msra.mxu0 0.0
        %1041 = vmatprep.subr.mxu0 0.0
        %1042 = vmatpush1.msra.mxu0 0.0
        %1043 = vmatprep.subr.mxu0 0.0
        %1044 = vmatpush1.msra.mxu0 0.0
        %1045 = vmatprep.subr.mxu0 0.0
        %1046 = vmatpush1.msra.mxu0 0.0
        %1047 = vmatprep.subr.mxu0 0.0
        %1048 = vmatpush1.msra.mxu0 0.0
        %1049 = vmatprep.subr.mxu0 0.0
        %1050 = vmatpush1.msra.mxu0 0.0
        %1051 = vmatprep.subr.mxu0 0.0
        %1052 = vmatpush1.msra.mxu0 0.0
        %1053 = vmatprep.subr.mxu0 0.0
        %1054 = vmatpush1.msra.mxu0 0.0
        %1055 = vmatprep.subr.mxu0 0.0
        %1056 = vmatpush1.msra.mxu0 0.0
        %1057 = vmatprep.subr.mxu0 0.0
        %1058 = vmatpush1.msra.mxu0 0.0
        %1059 = vmatprep.subr.mxu0 0.0
        %1060 = vmatpush1.msra.mxu0 0.0
        %1061 = vmatprep.subr.mxu0 0.0
        %1062 = vmatpush1.msra.mxu0 0.0
        %1063 = vmatprep.subr.mxu0 0.0
        %1064 = vmatpush1.msra.mxu0 0.0
        %1065 = vmatprep.subr.mxu0 0.0
        %1066 = vmatpush1.msra.mxu0 0.0
        %1067 = vmatprep.subr.mxu0 0.0
        %1068 = vmatpush1.msra.mxu0 0.0
        %1069 = vmatprep.subr.mxu0 0.0
        %1070 = vmatpush1.msra.mxu0 0.0
        %1071 = vmatprep.subr.mxu0 0.0
        %1072 = vmatpush1.msra.mxu0 0.0
        %1073 = vmatprep.subr.mxu0 0.0
        %1074 = vmatpush1.msra.mxu0 0.0
        %1075 = vmatprep.subr.mxu0 0.0
        %1076 = vmatpush1.msra.mxu0 0.0
        %1077 = vmatprep.subr.mxu0 0.0
        %1078 = vmatpush1.msra.mxu0 0.0
        %1079 = vmatprep.subr.mxu0 0.0
        %1080 = vmatpush1.msra.mxu0 0.0
        %1081 = vmatprep.subr.mxu0 0.0
        %1082 = vmatpush1.msra.mxu0 0.0
        %1083 = vmatprep.subr.mxu0 0.0
        %1084 = vmatpush1.msra.mxu0 0.0
        %1085 = vmatprep.subr.mxu0 0.0
        %1086 = vmatpush1.msra.mxu0 0.0
        %1087 = vmatprep.subr.mxu0 0.0
        %1088 = vmatpush1.msra.mxu0 0.0
        %1089 = vmatprep.subr.mxu0 0.0
        %1090 = vmatpush1.msra.mxu0 0.0
        %1091 = vmatprep.subr.mxu0 0.0
        %1092 = vmatpush1.msra.mxu0 0.0
        %1093 = vmatprep.mubr.f32.mxu0 0.0
        %1094 = vmatmul.mubr.f32.gmra.mrb[0].mxu0 %v1027
        %v1095 = vpop.f32.mrb[0].mxu0
        %v1096 = vadd.f32 0.0, %v1095
        %v1097 = vpop.f32.mrb[0].mxu0
        %v1098 = vadd.f32 0.0, %v1097
        %1099 = vdwg.mxu0
        %v1100 = vadd.f32 %v1003, %v1096
        %v1101 = vadd.f32 %v1004, %v1098
        %1102 = vrot.lane.b32.xlu0 %v435, 95
        %v1103 = vpop.permute.xlu0 %1102
        %1104 = vrot.lane.b32.xlu0 %v436, 95
        %v1105 = vpop.permute.xlu0 %1104
        %1106 = vrot.lane.b32.xlu0 %v437, 95
        %v1107 = vpop.permute.xlu0 %1106
        %1108 = vrot.lane.b32.xlu0 %v438, 95
        %v1109 = vpop.permute.xlu0 %1108
        %1110 = vrot.lane.b32.xlu0 %v439, 95
        %v1111 = vpop.permute.xlu0 %1110
        %1112 = vrot.lane.b32.xlu0 %v440, 95
        %v1113 = vpop.permute.xlu0 %1112
        %vm1114 = vcmask 777216
        %v1115 = vsel %vm1114, %v1103, %v1105
        %v1116 = vsel %vm1114, %v1105, %v1107
        %v1117 = vsel %vm1114, %v1109, %v1111
        %v1118 = vsel %vm1114, %v1111, %v1113
        %v1124 = vsel %vm468, %v308, 0
        %1126 = vmatprep.subr.mxu0 %v1116
        %1127 = vmatpush1.msra.mxu0 %v1115
        %1128 = vmatprep.subr.mxu0 %v1118
        %1129 = vmatpush1.msra.mxu0 %v1117
        %1130 = vmatprep.subr.mxu0 0.0
        %1131 = vmatpush1.msra.mxu0 0.0
        %1132 = vmatprep.subr.mxu0 0.0
        %1133 = vmatpush1.msra.mxu0 0.0
        %1134 = vmatprep.subr.mxu0 0.0
        %1135 = vmatpush1.msra.mxu0 0.0
        %1136 = vmatprep.subr.mxu0 0.0
        %1137 = vmatpush1.msra.mxu0 0.0
        %1138 = vmatprep.subr.mxu0 0.0
        %1139 = vmatpush1.msra.mxu0 0.0
        %1140 = vmatprep.subr.mxu0 0.0
        %1141 = vmatpush1.msra.mxu0 0.0
        %1142 = vmatprep.subr.mxu0 0.0
        %1143 = vmatpush1.msra.mxu0 0.0
        %1144 = vmatprep.subr.mxu0 0.0
        %1145 = vmatpush1.msra.mxu0 0.0
        %1146 = vmatprep.subr.mxu0 0.0
        %1147 = vmatpush1.msra.mxu0 0.0
        %1148 = vmatprep.subr.mxu0 0.0
        %1149 = vmatpush1.msra.mxu0 0.0
        %1150 = vmatprep.subr.mxu0 0.0
        %1151 = vmatpush1.msra.mxu0 0.0
        %1152 = vmatprep.subr.mxu0 0.0
        %1153 = vmatpush1.msra.mxu0 0.0
        %1154 = vmatprep.subr.mxu0 0.0
        %1155 = vmatpush1.msra.mxu0 0.0
        %1156 = vmatprep.subr.mxu0 0.0
        %1157 = vmatpush1.msra.mxu0 0.0
        %1158 = vmatprep.subr.mxu0 0.0
        %1159 = vmatpush1.msra.mxu0 0.0
        %1160 = vmatprep.subr.mxu0 0.0
        %1161 = vmatpush1.msra.mxu0 0.0
        %1162 = vmatprep.subr.mxu0 0.0
        %1163 = vmatpush1.msra.mxu0 0.0
        %1164 = vmatprep.subr.mxu0 0.0
        %1165 = vmatpush1.msra.mxu0 0.0
        %1166 = vmatprep.subr.mxu0 0.0
        %1167 = vmatpush1.msra.mxu0 0.0
        %1168 = vmatprep.subr.mxu0 0.0
        %1169 = vmatpush1.msra.mxu0 0.0
        %1170 = vmatprep.subr.mxu0 0.0
        %1171 = vmatpush1.msra.mxu0 0.0
        %1172 = vmatprep.subr.mxu0 0.0
        %1173 = vmatpush1.msra.mxu0 0.0
        %1174 = vmatprep.subr.mxu0 0.0
        %1175 = vmatpush1.msra.mxu0 0.0
        %1176 = vmatprep.subr.mxu0 0.0
        %1177 = vmatpush1.msra.mxu0 0.0
        %1178 = vmatprep.subr.mxu0 0.0
        %1179 = vmatpush1.msra.mxu0 0.0
        %1180 = vmatprep.subr.mxu0 0.0
        %1181 = vmatpush1.msra.mxu0 0.0
        %1182 = vmatprep.subr.mxu0 0.0
        %1183 = vmatpush1.msra.mxu0 0.0
        %1184 = vmatprep.subr.mxu0 0.0
        %1185 = vmatpush1.msra.mxu0 0.0
        %1186 = vmatprep.subr.mxu0 0.0
        %1187 = vmatpush1.msra.mxu0 0.0
        %1188 = vmatprep.subr.mxu0 0.0
        %1189 = vmatpush1.msra.mxu0 0.0
        %1190 = vmatprep.mubr.f32.mxu0 0.0
        %1191 = vmatmul.mubr.f32.gmra.mrb[0].mxu0 %v1124
        %v1192 = vpop.f32.mrb[0].mxu0
        %v1193 = vadd.f32 0.0, %v1192
        %v1194 = vpop.f32.mrb[0].mxu0
        %v1195 = vadd.f32 0.0, %v1194
        %1196 = vdwg.mxu0
        %v1197 = vadd.f32 %v1100, %v1193
        %v1198 = vadd.f32 %v1101, %v1195
        %1199 = vrot.lane.b32.xlu0 %v435, 94
        %v1200 = vpop.permute.xlu0 %1199
        %1201 = vrot.lane.b32.xlu0 %v436, 94
        %v1202 = vpop.permute.xlu0 %1201
        %1203 = vrot.lane.b32.xlu0 %v437, 94
        %v1204 = vpop.permute.xlu0 %1203
        %1205 = vrot.lane.b32.xlu0 %v438, 94
        %v1206 = vpop.permute.xlu0 %1205
        %1207 = vrot.lane.b32.xlu0 %v439, 94
        %v1208 = vpop.permute.xlu0 %1207
        %1209 = vrot.lane.b32.xlu0 %v440, 94
        %v1210 = vpop.permute.xlu0 %1209
        %vm1211 = vcmask 769024
        %v1212 = vsel %vm1211, %v1200, %v1202
        %v1213 = vsel %vm1211, %v1202, %v1204
        %v1214 = vsel %vm1211, %v1206, %v1208
        %v1215 = vsel %vm1211, %v1208, %v1210
        %v1221 = vsel %vm468, %v309, 0
        %1223 = vmatprep.subr.mxu0 %v1213
        %1224 = vmatpush1.msra.mxu0 %v1212
        %1225 = vmatprep.subr.mxu0 %v1215
        %1226 = vmatpush1.msra.mxu0 %v1214
        %1227 = vmatprep.subr.mxu0 0.0
        %1228 = vmatpush1.msra.mxu0 0.0
        %1229 = vmatprep.subr.mxu0 0.0
        %1230 = vmatpush1.msra.mxu0 0.0
        %1231 = vmatprep.subr.mxu0 0.0
        %1232 = vmatpush1.msra.mxu0 0.0
        %1233 = vmatprep.subr.mxu0 0.0
        %1234 = vmatpush1.msra.mxu0 0.0
        %1235 = vmatprep.subr.mxu0 0.0
        %1236 = vmatpush1.msra.mxu0 0.0
        %1237 = vmatprep.subr.mxu0 0.0
        %1238 = vmatpush1.msra.mxu0 0.0
        %1239 = vmatprep.subr.mxu0 0.0
        %1240 = vmatpush1.msra.mxu0 0.0
        %1241 = vmatprep.subr.mxu0 0.0
        %1242 = vmatpush1.msra.mxu0 0.0
        %1243 = vmatprep.subr.mxu0 0.0
        %1244 = vmatpush1.msra.mxu0 0.0
        %1245 = vmatprep.subr.mxu0 0.0
        %1246 = vmatpush1.msra.mxu0 0.0
        %1247 = vmatprep.subr.mxu0 0.0
        %1248 = vmatpush1.msra.mxu0 0.0
        %1249 = vmatprep.subr.mxu0 0.0
        %1250 = vmatpush1.msra.mxu0 0.0
        %1251 = vmatprep.subr.mxu0 0.0
        %1252 = vmatpush1.msra.mxu0 0.0
        %1253 = vmatprep.subr.mxu0 0.0
        %1254 = vmatpush1.msra.mxu0 0.0
        %1255 = vmatprep.subr.mxu0 0.0
        %1256 = vmatpush1.msra.mxu0 0.0
        %1257 = vmatprep.subr.mxu0 0.0
        %1258 = vmatpush1.msra.mxu0 0.0
        %1259 = vmatprep.subr.mxu0 0.0
        %1260 = vmatpush1.msra.mxu0 0.0
        %1261 = vmatprep.subr.mxu0 0.0
        %1262 = vmatpush1.msra.mxu0 0.0
        %1263 = vmatprep.subr.mxu0 0.0
        %1264 = vmatpush1.msra.mxu0 0.0
        %1265 = vmatprep.subr.mxu0 0.0
        %1266 = vmatpush1.msra.mxu0 0.0
        %1267 = vmatprep.subr.mxu0 0.0
        %1268 = vmatpush1.msra.mxu0 0.0
        %1269 = vmatprep.subr.mxu0 0.0
        %1270 = vmatpush1.msra.mxu0 0.0
        %1271 = vmatprep.subr.mxu0 0.0
        %1272 = vmatpush1.msra.mxu0 0.0
        %1273 = vmatprep.subr.mxu0 0.0
        %1274 = vmatpush1.msra.mxu0 0.0
        %1275 = vmatprep.subr.mxu0 0.0
        %1276 = vmatpush1.msra.mxu0 0.0
        %1277 = vmatprep.subr.mxu0 0.0
        %1278 = vmatpush1.msra.mxu0 0.0
        %1279 = vmatprep.subr.mxu0 0.0
        %1280 = vmatpush1.msra.mxu0 0.0
        %1281 = vmatprep.subr.mxu0 0.0
        %1282 = vmatpush1.msra.mxu0 0.0
        %1283 = vmatprep.subr.mxu0 0.0
        %1284 = vmatpush1.msra.mxu0 0.0
        %1285 = vmatprep.subr.mxu0 0.0
        %1286 = vmatpush1.msra.mxu0 0.0
        %1287 = vmatprep.mubr.f32.mxu0 0.0
        %1288 = vmatmul.mubr.f32.gmra.mrb[0].mxu0 %v1221
        %v1289 = vpop.f32.mrb[0].mxu0
        %v1290 = vadd.f32 0.0, %v1289
        %v1291 = vpop.f32.mrb[0].mxu0
        %v1292 = vadd.f32 0.0, %v1291
        %1293 = vdwg.mxu0
        %v1294 = vadd.f32 %v1197, %v1290
        %v1295 = vadd.f32 %v1198, %v1292
        %v1298 = vcombine.low %v1294, %v1295
        %1300 = vst [vmem:[%s240] sm:$0xff] %v1298
        %s1301 = sand.u32 %s119, 1
        %s1302 = scalar_lea.sflag [#allocation5], %s1301
        %s1303 = sand.u32 %s119, 1
        %s1304 = smul.addr %s1303, 8
        %s1305 = scalar_lea.vmem [#allocation9], %s1304
        // Predicated region
        $region49: #{tpu_custom_call.1} parent=35 // pred_check
          %p1306 = pneg %p129
        $region50: #{tpu_custom_call.1} parent=35 // pred_check_branch
          %1308 = sbr.rel (%p1306) target = $region52
        $region51: #{tpu_custom_call.1} parent=35 // pred_region
          %s1310 = ssub.s32 128, 128
          %1311 = vsyncadd %s1302, %s1310
          %s1312 = smul.addr %s22, 2
          %s1313 = smul.addr %s1312, 64
          %s1314 = scalar_lea.hbm %s4, %s1313
          %s1316 = sshll.u32 %s1305, 4
          %s1317 = int_to_ptr.vmem [resolvable:$true] %s1316
          %1319 = dma.vmem_to_hbm [thread:$0]  %s1317, 128, %s1314, %s1302
        $region52: #{tpu_custom_call.1} parent=35 // pred_fallthru
          _
      $region36: #{tpu_custom_call.1} parent=5 // pred_fallthru
        _
      %p1320 = scmp.le.s32.totalorder 2, %s17
      // Predicated region
      $region53: #{tpu_custom_call.1} parent=5 // pred_check
        %p1321 = pneg %p1320
      $region54: #{tpu_custom_call.1} parent=5 // pred_check_branch
        %1323 = sbr.rel (%p1321) target = $region56
      $region55: #{tpu_custom_call.1} parent=5 // pred_region
        %s1324 = ssub.s32 %s17, 2
        // Predicated region
        $region57: #{tpu_custom_call.1} parent=55 // pred_check
          %p1325 = pneg %p135
        $region58: #{tpu_custom_call.1} parent=55 // pred_check_branch
          %1327 = sbr.rel (%p1325) target = $region60
        $region59: #{tpu_custom_call.1} parent=55 // pred_region
          %s1328 = sand.u32 %s120, 1
          %s1329 = scalar_lea.sflag [#allocation5], %s1328
          %s1330 = sand.u32 %s120, 1
          %s1331 = smul.addr %s1330, 8
          %s1332 = scalar_lea.vmem [#allocation9], %s1331
          %1333 = dma.done %s1329, 128
        $region60: #{tpu_custom_call.1} parent=55 // pred_fallthru
          _
      $region56: #{tpu_custom_call.1} parent=5 // pred_fallthru
        _
    $region6: #{tpu_custom_call.1} parent=1 // loop_footer
      %s21 = sadd.s32 1, %s17
    $region7: #{tpu_custom_call.1} parent=1 // loop_footer_branch
      %16 = sbr.rel target = $region3
    $region8: #{tpu_custom_call.1} parent=1 // loop_exit
      _
    %1334 = vsyncpa [#allocation4], 1
    %s1335 = scalar_lea.sflag [#allocation4], 1
    %1336 = vsyncpa %s1335, 1
    %1337 = vsyncpa [#allocation7], 1
    %1338 = vsyncpa [#allocation5], 1
    %s1339 = scalar_lea.sflag [#allocation5], 1
    %1340 = vsyncpa %s1339, 1

</llo_original>
